<compile_context>
chip_gen: v7x
topology: tpu7x:2x2x1
jax: 0.10.0
libtpu: 0.0.40
codegen_flags: <defaults>
</compile_context>

<pallas_src>
import functools

import jax
import jax.numpy as jnp
from jax.experimental import pallas as pl
from jax.experimental.pallas import tpu as pltpu


def _round_up(n, m):
    return ((n + m - 1) // m) * m


def classify_ae_kernel(x_ref, we_ref, be_ref, wcat_ref, bcat_ref,
                       y_ref, xrec_ref, *, out_pad):
    # x_ref: (TB, In) bf16; weights bf16; biases f32; all math accumulated in f32.
    x = x_ref[...]
    # encoder: Linear + Tanh (f32 accumulate, f32 bias/activation)
    z = jnp.tanh(
        jnp.dot(x, we_ref[...], preferred_element_type=jnp.float32)
        + be_ref[...]
    )                                                    # (TB, Hid) f32
    # fused classifier + decoder: one lane-dense (Hid, out_pad+In) matmul
    h = (jnp.dot(z.astype(wcat_ref.dtype), wcat_ref[...],
                 preferred_element_type=jnp.float32)
         + bcat_ref[...])                                # (TB, out_pad+In) f32
    # classifier head (padded to 128 lanes; sliced outside the kernel)
    y_ref[...] = h[:, :out_pad].astype(y_ref.dtype)
    # decoder: Sigmoid = 1 / (1 + exp(-x)); exp on EUP, approx reciprocal on EUP
    logits = h[:, out_pad:]
    xrec_ref[...] = pl.reciprocal(1.0 + jnp.exp(-logits),
                                  approx=True).astype(xrec_ref.dtype)


def classify_ae_forward(x, params, *, tb=256):
    """Fused ClassifyAE forward: returns (y_hat, x_rec)."""
    we, be, wc, bc, wd, bd = params
    B, In = x.shape
    Hid = we.shape[1]
    Out = wc.shape[1]
    out_pad = _round_up(Out, 128)        # lane-dense classifier output
    ncat = out_pad + In                  # fused clf|decoder output width

    # Batch tile: multiple of 16 (bf16 sublane packing); clamp to padded batch.
    tb = min(tb, max(16, _round_up(B, 16)))
    Bp = _round_up(B, tb)
    grid = (Bp // tb,)

    # bf16 matmul operands (halve HBM bytes, full MXU rate); biases stay f32.
    xp = jnp.zeros((Bp, In), jnp.bfloat16).at[:B].set(x.astype(jnp.bfloat16))
    we_b = we.astype(jnp.bfloat16)
    be32 = be.astype(jnp.float32)
    wc_pad = jnp.zeros((Hid, out_pad), jnp.float32).at[:, :Out].set(wc)
    bc_pad = jnp.zeros((1, out_pad), jnp.float32).at[:, :Out].set(bc)
    wcat = jnp.concatenate([wc_pad, wd], axis=1).astype(jnp.bfloat16)
    bcat = jnp.concatenate([bc_pad, bd], axis=1).astype(jnp.float32)

    kern = functools.partial(classify_ae_kernel, out_pad=out_pad)

    y_pad, x_rec = pl.pallas_call(
        kern,
        out_shape=(
            jax.ShapeDtypeStruct((Bp, out_pad), jnp.float32),
            jax.ShapeDtypeStruct((Bp, In), jnp.float32),
        ),
        grid=grid,
        in_specs=[
            pl.BlockSpec((tb, In), lambda i: (i, 0)),        # x batch tile
            pl.BlockSpec((In, Hid), lambda i: (0, 0)),       # encoder W (resident)
            pl.BlockSpec((1, Hid), lambda i: (0, 0)),        # encoder b (resident)
            pl.BlockSpec((Hid, ncat), lambda i: (0, 0)),     # fused clf|dec W
            pl.BlockSpec((1, ncat), lambda i: (0, 0)),       # fused clf|dec b
        ],
        out_specs=(
            pl.BlockSpec((tb, out_pad), lambda i: (i, 0)),   # y (lane-dense, padded)
            pl.BlockSpec((tb, In), lambda i: (i, 0)),        # x_rec
        ),
        compiler_params=pltpu.CompilerParams(
            dimension_semantics=("parallel",)),              # megacore on v7x
    )(xp, we_b, be32, wcat, bcat)

    return y_pad[:B, :Out], x_rec[:B]


def init_params(key, in_features, hid_features, out_features):
    """Mimics nn.Linear's U(-1/sqrt(fan_in), 1/sqrt(fan_in)) init.
    Weights stored as (fan_in, fan_out) (transposed vs torch)."""
    k = jax.random.split(key, 6)

    def lin(kw, kb, fan_in, fan_out):
        bound = 1.0 / jnp.sqrt(jnp.float32(fan_in))
        w = jax.random.uniform(kw, (fan_in, fan_out), jnp.float32, -bound, bound)
        b = jax.random.uniform(kb, (1, fan_out), jnp.float32, -bound, bound)
        return w, b

    we, be = lin(k[0], k[1], in_features, hid_features)   # encoder
    wc, bc = lin(k[2], k[3], hid_features, out_features)  # clf
    wd, bd = lin(k[4], k[5], hid_features, in_features)   # decoder
    return we, be, wc, bc, wd, bd


def reference_forward(x, params):
    we, be, wc, bc, wd, bd = params
    z = jnp.tanh(x @ we + be)
    y_hat = z @ wc + bc
    x_rec = jax.nn.sigmoid(z @ wd + bd)
    return y_hat, x_rec


if __name__ == "__main__":
    B, IN, HID, OUT = 8, 256, 128, 10

    key = jax.random.PRNGKey(0)
    kx, kp = jax.random.split(key)
    x = jax.random.normal(kx, (B, IN), jnp.float32)
    params = init_params(kp, IN, HID, OUT)

    y_hat, x_rec = classify_ae_forward(x, params)
    y_hat = jax.block_until_ready(y_hat)
    x_rec = jax.block_until_ready(x_rec)

    y_ref, xr_ref = reference_forward(x, params)
    assert y_hat.shape == (B, OUT) and x_rec.shape == (B, IN)
    # bf16 matmul operands + approx reciprocal -> loosened tolerance vs f32 ref
    assert jnp.allclose(y_hat, y_ref, atol=2e-2, rtol=2e-2)
    assert jnp.allclose(x_rec, xr_ref, atol=2e-2, rtol=2e-2)

    print("KERNEL_OK")
</pallas_src>

<mosaic_0001>
module attributes {stable_mosaic.version = 11 : i64} {
  func.func @classify_ae_kernel(%arg0: i32, %arg1: memref<16x256xbf16, #tpu.memory_space<vmem>>, %arg2: memref<256x128xbf16, #tpu.memory_space<vmem>>, %arg3: memref<1x128xf32, #tpu.memory_space<vmem>>, %arg4: memref<128x384xbf16, #tpu.memory_space<vmem>>, %arg5: memref<1x384xf32, #tpu.memory_space<vmem>>, %arg6: memref<16x128xf32, #tpu.memory_space<vmem>>, %arg7: memref<16x256xf32, #tpu.memory_space<vmem>>) attributes {dimension_semantics = [#tpu.dimension_semantics<parallel>], iteration_bounds = array<i64: 1>, scalar_prefetch = 0 : i64, scratch_operands = 0 : i64, tpu.core_type = #tpu.core_type<tc>, window_params = [{transform_indices = @transform_0, window_bounds = array<i64: 16, 256>}, {pipeline_mode = #tpu.pipeline_mode<synchronous>, transform_indices = @transform_1, window_bounds = array<i64: 256, 128>}, {pipeline_mode = #tpu.pipeline_mode<synchronous>, transform_indices = @transform_2, window_bounds = array<i64: 1, 128>}, {pipeline_mode = #tpu.pipeline_mode<synchronous>, transform_indices = @transform_3, window_bounds = array<i64: 128, 384>}, {pipeline_mode = #tpu.pipeline_mode<synchronous>, transform_indices = @transform_4, window_bounds = array<i64: 1, 384>}, {transform_indices = @transform_5, window_bounds = array<i64: 16, 128>}, {transform_indices = @transform_6, window_bounds = array<i64: 16, 256>}]} {
    %c0 = arith.constant 0 : index
    %c0_0 = arith.constant 0 : index
    %0 = vector.load %arg1[%c0, %c0_0] : memref<16x256xbf16, #tpu.memory_space<vmem>>, vector<16x256xbf16>
    %c0_1 = arith.constant 0 : index
    %c0_2 = arith.constant 0 : index
    %1 = vector.load %arg2[%c0_1, %c0_2] : memref<256x128xbf16, #tpu.memory_space<vmem>>, vector<256x128xbf16>
    %cst = arith.constant dense<0.000000e+00> : vector<16x128xf32>
    %2 = tpu.matmul %0, %1, %cst {dimension_numbers = #tpu.dot_dimension_numbers<[1], [0], [0], [1], [0, 0, 1, 1], [], []>} : vector<16x256xbf16>, vector<256x128xbf16>, vector<16x128xf32> -> vector<16x128xf32>
    %c0_3 = arith.constant 0 : index
    %c0_4 = arith.constant 0 : index
    %3 = vector.load %arg3[%c0_3, %c0_4] : memref<1x128xf32, #tpu.memory_space<vmem>>, vector<1x128xf32>
    %4 = vector.broadcast %3 : vector<1x128xf32> to vector<16x128xf32>
    %5 = arith.addf %2, %4 : vector<16x128xf32>
    %6 = math.tanh %5 : vector<16x128xf32>
    %7 = arith.truncf %6 : vector<16x128xf32> to vector<16x128xbf16>
    %c0_5 = arith.constant 0 : index
    %c0_6 = arith.constant 0 : index
    %8 = vector.load %arg4[%c0_5, %c0_6] : memref<128x384xbf16, #tpu.memory_space<vmem>>, vector<128x384xbf16>
    %cst_7 = arith.constant dense<0.000000e+00> : vector<16x384xf32>
    %9 = tpu.matmul %7, %8, %cst_7 {dimension_numbers = #tpu.dot_dimension_numbers<[1], [0], [0], [1], [0, 0, 1, 1], [], []>} : vector<16x128xbf16>, vector<128x384xbf16>, vector<16x384xf32> -> vector<16x384xf32>
    %c0_8 = arith.constant 0 : index
    %c0_9 = arith.constant 0 : index
    %10 = vector.load %arg5[%c0_8, %c0_9] : memref<1x384xf32, #tpu.memory_space<vmem>>, vector<1x384xf32>
    %11 = vector.broadcast %10 : vector<1x384xf32> to vector<16x384xf32>
    %12 = arith.addf %9, %11 : vector<16x384xf32>
    %13 = vector.extract_strided_slice %12 {offsets = [0, 0], sizes = [16, 128], strides = [1, 1]} : vector<16x384xf32> to vector<16x128xf32>
    %c0_10 = arith.constant 0 : index
    %c0_11 = arith.constant 0 : index
    %14 = vector.load %arg6[%c0_10, %c0_11] : memref<16x128xf32, #tpu.memory_space<vmem>>, vector<16x128xf32>
    tpu.vector_store %arg6[%c0_10, %c0_11], %13 {strides = array<i32>} : memref<16x128xf32, #tpu.memory_space<vmem>>, vector<16x128xf32>,
    %15 = vector.extract_strided_slice %12 {offsets = [0, 128], sizes = [16, 256], strides = [1, 1]} : vector<16x384xf32> to vector<16x256xf32>
    %cst_12 = arith.constant 0.000000e+00 : f32
    %16 = vector.broadcast %cst_12 : f32 to vector<16x256xf32>
    %17 = arith.subf %16, %15 : vector<16x256xf32>
    %18 = math.exp %17 : vector<16x256xf32>
    %cst_13 = arith.constant 1.000000e+00 : f32
    %19 = vector.broadcast %cst_13 : f32 to vector<16x256xf32>
    %20 = arith.addf %19, %18 : vector<16x256xf32>
    %21 = tpu.reciprocal %20 {approx = true} : vector<16x256xf32> -> vector<16x256xf32>
    %c0_14 = arith.constant 0 : index
    %c0_15 = arith.constant 0 : index
    %22 = vector.load %arg7[%c0_14, %c0_15] : memref<16x256xf32, #tpu.memory_space<vmem>>, vector<16x256xf32>
    tpu.vector_store %arg7[%c0_14, %c0_15], %21 {strides = array<i32>} : memref<16x256xf32, #tpu.memory_space<vmem>>, vector<16x256xf32>,
    return
  }
  func.func @transform_0(%arg0: i32) -> (i32, i32) {
    %c0_i32 = arith.constant 0 : i32
    %c0_i32_0 = arith.constant 0 : i32
    return %arg0, %c0_i32 : i32, i32
  }
  func.func @transform_1(%arg0: i32) -> (i32, i32) {
    %c0_i32 = arith.constant 0 : i32
    %c0_i32_0 = arith.constant 0 : i32
    %c0_i32_1 = arith.constant 0 : i32
    return %c0_i32, %c0_i32_0 : i32, i32
  }
  func.func @transform_2(%arg0: i32) -> (i32, i32) {
    %c0_i32 = arith.constant 0 : i32
    %c0_i32_0 = arith.constant 0 : i32
    %c0_i32_1 = arith.constant 0 : i32
    return %c0_i32, %c0_i32_0 : i32, i32
  }
  func.func @transform_3(%arg0: i32) -> (i32, i32) {
    %c0_i32 = arith.constant 0 : i32
    %c0_i32_0 = arith.constant 0 : i32
    %c0_i32_1 = arith.constant 0 : i32
    return %c0_i32, %c0_i32_0 : i32, i32
  }
  func.func @transform_4(%arg0: i32) -> (i32, i32) {
    %c0_i32 = arith.constant 0 : i32
    %c0_i32_0 = arith.constant 0 : i32
    %c0_i32_1 = arith.constant 0 : i32
    return %c0_i32, %c0_i32_0 : i32, i32
  }
  func.func @transform_5(%arg0: i32) -> (i32, i32) {
    %c0_i32 = arith.constant 0 : i32
    %c0_i32_0 = arith.constant 0 : i32
    return %arg0, %c0_i32 : i32, i32
  }
  func.func @transform_6(%arg0: i32) -> (i32, i32) {
    %c0_i32 = arith.constant 0 : i32
    %c0_i32_0 = arith.constant 0 : i32
    return %arg0, %c0_i32 : i32, i32
  }
}

</mosaic_0001>

<llo_original>
// kernel: tpu_custom_call.1
$region0: #{tpu_custom_call.1}
  #allocation0 [shape = 'u32[]', space=smem, size = 0x4, offset = 0x4, fixed_abs, tag = 'smem constant byte address 0x4 - core index']
  #allocation1 [shape = 'u32[144,128]{1,0:T(1,128)}', space=vmem, size = 0x12000, scoped, tag = 'internal scratch']
  %s0 = inlined_call_operand.hbm [shape: bf16[16,256], index: 0, kind: input, shape index: {}]
  %s1 = inlined_call_operand.hbm [shape: bf16[256,128], index: 1, kind: input, shape index: {}]
  %s2 = inlined_call_operand.vmem [shape: f32[1,128], index: 2, kind: input, shape index: {}]
  %s3 = inlined_call_operand.hbm [shape: bf16[128,384], index: 3, kind: input, shape index: {}]
  %s4 = inlined_call_operand.vmem [shape: f32[1,384], index: 4, kind: input, shape index: {}]
  %s5 = inlined_call_operand.hbm [shape: f32[16,128], index: 5, kind: output, shape index: {0}]
  %s6 = inlined_call_operand.hbm [shape: f32[16,256], index: 6, kind: output, shape index: {1}]
  %7 = xla_tuple %s5, %s6
  %s8 = sld [smem:[#allocation0]]
  $region50: #{tpu_custom_call.1} parent=0
    _
  %s10 = ssub.s32 1, %s8
  %s11 = scalar_select 0, %s10, %s8
  $region1: #{tpu_custom_call.1} parent=0
    #allocation2 [shape = 'u8[8192]{0}', space=vmem, size = 0x2000, scoped, tag = 'input window, operand 0, single buffered']
    #allocation3 [shape = 's32[1]{0}', space=sflag, size = 0x4, scoped, tag = 'scoped memory for tpu_custom_call.1']
    #allocation4 [shape = 's32[1]{0}', space=sflag, size = 0x4, scoped, tag = 'scoped memory for tpu_custom_call.1']
    #allocation5 [shape = 'u8[65536]{0}', space=vmem, size = 0x10000, scoped, tag = 'input window, operand 1, single buffered']
    #allocation6 [shape = 's32[1]{0}', space=sflag, size = 0x4, scoped, tag = 'scoped memory for tpu_custom_call.1']
    #allocation7 [shape = 'u8[98304]{0}', space=vmem, size = 0x18000, scoped, tag = 'input window, operand 3, single buffered']
    #allocation8 [shape = 'u8[8192]{0}', space=vmem, size = 0x2000, scoped, tag = 'output window, operand 0, single buffered']
    #allocation9 [shape = 'u8[16384]{0}', space=vmem, size = 0x4000, scoped, tag = 'output window, operand 1, single buffered']
    #allocation10 [shape = 's32[1]{0}', space=sflag, size = 0x4, scoped, tag = 'scoped memory for tpu_custom_call.1']
    %12 = vsyncpa [#allocation3], 0
    %13 = vsyncpa [#allocation6], 0
    %14 = vsyncpa [#allocation4], 0
    %15 = vsyncpa [#allocation10], 0
    // Predicated region
    $region2: #{tpu_custom_call.1} parent=1 // pred_check
      _
    $region3: #{tpu_custom_call.1} parent=1 // pred_check_branch
      %17 = sbr.rel (0) target = $region5
    $region4: #{tpu_custom_call.1} parent=1 // pred_region
      %s19 = ssub.s32 256, 256
      %20 = vsyncadd [#allocation3], %s19
      %s21 = sshll.u32 [#allocation2], 4
      %s22 = int_to_ptr.vmem [resolvable:$true] %s21
      %27 = dma.hbm_to_vmem [thread:$0]  %s0, 256, %s22, [#allocation3], 128, 128, 8
    $region5: #{tpu_custom_call.1} parent=1 // pred_fallthru
      _
    // Predicated region
    $region6: #{tpu_custom_call.1} parent=1 // pred_check
      _
    $region7: #{tpu_custom_call.1} parent=1 // pred_check_branch
      %29 = sbr.rel (0) target = $region9
    $region8: #{tpu_custom_call.1} parent=1 // pred_region
      %s31 = ssub.s32 2048, 2048
      %32 = vsyncadd [#allocation6], %s31
      %s33 = sshll.u32 [#allocation5], 4
      %s34 = int_to_ptr.vmem [resolvable:$true] %s33
      %39 = dma.hbm_to_vmem [thread:$0]  %s1, 2048, %s34, [#allocation6], 64, 64, 4
    $region9: #{tpu_custom_call.1} parent=1 // pred_fallthru
      _
    // Predicated region
    $region10: #{tpu_custom_call.1} parent=1 // pred_check
      _
    $region11: #{tpu_custom_call.1} parent=1 // pred_check_branch
      %41 = sbr.rel (0) target = $region13
    $region12: #{tpu_custom_call.1} parent=1 // pred_region
      _
    $region13: #{tpu_custom_call.1} parent=1 // pred_fallthru
      _
    // Predicated region
    $region14: #{tpu_custom_call.1} parent=1 // pred_check
      _
    $region15: #{tpu_custom_call.1} parent=1 // pred_check_branch
      %43 = sbr.rel (0) target = $region17
    $region16: #{tpu_custom_call.1} parent=1 // pred_region
      %s45 = ssub.s32 3072, 3072
      %46 = vsyncadd [#allocation6], %s45
      %s47 = sshll.u32 [#allocation7], 4
      %s48 = int_to_ptr.vmem [resolvable:$true] %s47
      %53 = dma.hbm_to_vmem [thread:$0]  %s3, 3072, %s48, [#allocation6], 192, 192, 12
    $region17: #{tpu_custom_call.1} parent=1 // pred_fallthru
      _
    // Predicated region
    $region18: #{tpu_custom_call.1} parent=1 // pred_check
      _
    $region19: #{tpu_custom_call.1} parent=1 // pred_check_branch
      %55 = sbr.rel (0) target = $region21
    $region20: #{tpu_custom_call.1} parent=1 // pred_region
      _
    $region21: #{tpu_custom_call.1} parent=1 // pred_fallthru
      _
    // Predicated region
    $region22: #{tpu_custom_call.1} parent=1 // pred_check
      _
    $region23: #{tpu_custom_call.1} parent=1 // pred_check_branch
      %57 = sbr.rel (0) target = $region25
    $region24: #{tpu_custom_call.1} parent=1 // pred_region
      %58 = dma.done [#allocation3], 256
    $region25: #{tpu_custom_call.1} parent=1 // pred_fallthru
      _
    // Predicated region
    $region26: #{tpu_custom_call.1} parent=1 // pred_check
      _
    $region27: #{tpu_custom_call.1} parent=1 // pred_check_branch
      %60 = sbr.rel (0) target = $region29
    $region28: #{tpu_custom_call.1} parent=1 // pred_region
      %61 = dma.done [#allocation6], 2048
    $region29: #{tpu_custom_call.1} parent=1 // pred_fallthru
      _
    // Predicated region
    $region30: #{tpu_custom_call.1} parent=1 // pred_check
      _
    $region31: #{tpu_custom_call.1} parent=1 // pred_check_branch
      %63 = sbr.rel (0) target = $region33
    $region32: #{tpu_custom_call.1} parent=1 // pred_region
      %64 = dma.done [#allocation6], 3072
    $region33: #{tpu_custom_call.1} parent=1 // pred_fallthru
      _
    %v66 = vld [vmem:[#allocation2] sm:$0xff]
    %v67 = vld [vmem:[#allocation2 + $0x8] sm:$0xff]
    %v68 = vld [vmem:[#allocation5] sm:$0xf]
    %v69 = vld [vmem:[#allocation5 + $0x4] sm:$0xf]
    %v70 = vld [vmem:[#allocation5 + $0x8] sm:$0xf]
    %v71 = vld [vmem:[#allocation5 + $0xc] sm:$0xf]
    %v72 = vld [vmem:[#allocation5 + $0x10] sm:$0xf]
    %v73 = vld [vmem:[#allocation5 + $0x14] sm:$0xf]
    %v74 = vld [vmem:[#allocation5 + $0x18] sm:$0xf]
    %v75 = vld [vmem:[#allocation5 + $0x1c] sm:$0xf]
    %v76 = vld [vmem:[#allocation5 + $0x20] sm:$0xf]
    %v77 = vld [vmem:[#allocation5 + $0x24] sm:$0xf]
    %v78 = vld [vmem:[#allocation5 + $0x28] sm:$0xf]
    %v79 = vld [vmem:[#allocation5 + $0x2c] sm:$0xf]
    %v80 = vld [vmem:[#allocation5 + $0x30] sm:$0xf]
    %v81 = vld [vmem:[#allocation5 + $0x34] sm:$0xf]
    %v82 = vld [vmem:[#allocation5 + $0x38] sm:$0xf]
    %v83 = vld [vmem:[#allocation5 + $0x3c] sm:$0xf]
    %v84 = vld [vmem:[#allocation5 + $0x40] sm:$0xf]
    %v85 = vld [vmem:[#allocation5 + $0x44] sm:$0xf]
    %v86 = vld [vmem:[#allocation5 + $0x48] sm:$0xf]
    %v87 = vld [vmem:[#allocation5 + $0x4c] sm:$0xf]
    %v88 = vld [vmem:[#allocation5 + $0x50] sm:$0xf]
    %v89 = vld [vmem:[#allocation5 + $0x54] sm:$0xf]
    %v90 = vld [vmem:[#allocation5 + $0x58] sm:$0xf]
    %v91 = vld [vmem:[#allocation5 + $0x5c] sm:$0xf]
    %v92 = vld [vmem:[#allocation5 + $0x60] sm:$0xf]
    %v93 = vld [vmem:[#allocation5 + $0x64] sm:$0xf]
    %v94 = vld [vmem:[#allocation5 + $0x68] sm:$0xf]
    %v95 = vld [vmem:[#allocation5 + $0x6c] sm:$0xf]
    %v96 = vld [vmem:[#allocation5 + $0x70] sm:$0xf]
    %v97 = vld [vmem:[#allocation5 + $0x74] sm:$0xf]
    %v98 = vld [vmem:[#allocation5 + $0x78] sm:$0xf]
    %v99 = vld [vmem:[#allocation5 + $0x7c] sm:$0xf]
    %v100 = vld [vmem:[%s2] sm:$0x1]
    %v102 = vlaneseq
    %v103 = vshrl.u32 %v102, 7
    %v104 = vsub.s32 0, %v103
    %v105 = vrot.slane %v100, %v104
    %v109 = vunpack.c.l.b16 %v66
    %v110 = vunpack.c.h.b16 %v66
    %v111 = vunpack.c.l.b16 %v67
    %v112 = vunpack.c.h.b16 %v67
    %v113 = vpack.c.b16 %v111, %v109
    %v114 = vpack.c.b16 %v112, %v110
    %v149 = vunpack.c.l.b16 %v68
    %v150 = vunpack.c.l.b16 %v69
    %v151 = vunpack.c.l.b16 %v70
    %v152 = vunpack.c.l.b16 %v71
    %v153 = vunpack.c.l.b16 %v72
    %v154 = vunpack.c.l.b16 %v73
    %v155 = vunpack.c.l.b16 %v74
    %v156 = vunpack.c.l.b16 %v75
    %v157 = vunpack.c.l.b16 %v76
    %v158 = vunpack.c.l.b16 %v77
    %v159 = vunpack.c.l.b16 %v78
    %v160 = vunpack.c.l.b16 %v79
    %v161 = vunpack.c.l.b16 %v80
    %v162 = vunpack.c.l.b16 %v81
    %v163 = vunpack.c.l.b16 %v82
    %v164 = vunpack.c.l.b16 %v83
    %v165 = vunpack.c.l.b16 %v84
    %v166 = vunpack.c.l.b16 %v85
    %v167 = vunpack.c.l.b16 %v86
    %v168 = vunpack.c.l.b16 %v87
    %v169 = vunpack.c.l.b16 %v88
    %v170 = vunpack.c.l.b16 %v89
    %v171 = vunpack.c.l.b16 %v90
    %v172 = vunpack.c.l.b16 %v91
    %v173 = vunpack.c.l.b16 %v92
    %v174 = vunpack.c.l.b16 %v93
    %v175 = vunpack.c.l.b16 %v94
    %v176 = vunpack.c.l.b16 %v95
    %v177 = vunpack.c.l.b16 %v96
    %v178 = vunpack.c.l.b16 %v97
    %v179 = vunpack.c.l.b16 %v98
    %v180 = vunpack.c.l.b16 %v99
    %v181 = vpack.c.b16 %v150, %v149
    %v182 = vpack.c.b16 %v152, %v151
    %v183 = vpack.c.b16 %v154, %v153
    %v184 = vpack.c.b16 %v156, %v155
    %v185 = vpack.c.b16 %v158, %v157
    %v186 = vpack.c.b16 %v160, %v159
    %v187 = vpack.c.b16 %v162, %v161
    %v188 = vpack.c.b16 %v164, %v163
    %v189 = vpack.c.b16 %v166, %v165
    %v190 = vpack.c.b16 %v168, %v167
    %v191 = vpack.c.b16 %v170, %v169
    %v192 = vpack.c.b16 %v172, %v171
    %v193 = vpack.c.b16 %v174, %v173
    %v194 = vpack.c.b16 %v176, %v175
    %v195 = vpack.c.b16 %v178, %v177
    %v196 = vpack.c.b16 %v180, %v179
    %213 = vmatprep.subr.bf16.mxu0 0
    %214 = vmatpush1.bf16.msra.mxu0 %v181
    %215 = vmatprep.subr.bf16.mxu0 0
    %216 = vmatpush1.bf16.msra.mxu0 %v182
    %217 = vmatprep.subr.bf16.mxu0 0
    %218 = vmatpush1.bf16.msra.mxu0 %v183
    %219 = vmatprep.subr.bf16.mxu0 0
    %220 = vmatpush1.bf16.msra.mxu0 %v184
    %221 = vmatprep.subr.bf16.mxu0 0
    %222 = vmatpush1.bf16.msra.mxu0 %v185
    %223 = vmatprep.subr.bf16.mxu0 0
    %224 = vmatpush1.bf16.msra.mxu0 %v186
    %225 = vmatprep.subr.bf16.mxu0 0
    %226 = vmatpush1.bf16.msra.mxu0 %v187
    %227 = vmatprep.subr.bf16.mxu0 0
    %228 = vmatpush1.bf16.msra.mxu0 %v188
    %229 = vmatprep.subr.bf16.mxu0 0
    %230 = vmatpush1.bf16.msra.mxu0 %v189
    %231 = vmatprep.subr.bf16.mxu0 0
    %232 = vmatpush1.bf16.msra.mxu0 %v190
    %233 = vmatprep.subr.bf16.mxu0 0
    %234 = vmatpush1.bf16.msra.mxu0 %v191
    %235 = vmatprep.subr.bf16.mxu0 0
    %236 = vmatpush1.bf16.msra.mxu0 %v192
    %237 = vmatprep.subr.bf16.mxu0 0
    %238 = vmatpush1.bf16.msra.mxu0 %v193
    %239 = vmatprep.subr.bf16.mxu0 0
    %240 = vmatpush1.bf16.msra.mxu0 %v194
    %241 = vmatprep.subr.bf16.mxu0 0
    %242 = vmatpush1.bf16.msra.mxu0 %v195
    %243 = vmatprep.subr.bf16.mxu0 0
    %244 = vmatpush1.bf16.msra.mxu0 %v196
    %245 = vmatprep.mubr.bf16.mxu0 %v114
    %246 = vmatmul.mubr.bf16.gmra.mrb[0].mxu0 %v113
    %v247 = vpop.f32.mrb[0].mxu0
    %v248 = vadd.f32 %v105, %v247
    %v249 = vpop.f32.mrb[0].mxu0
    %v250 = vpop.f32.mrb[0].mxu0
    %v251 = vadd.f32 %v105, %v250
    %v252 = vpop.f32.mrb[0].mxu0
    %253 = vdwg.mxu0
    %v254 = vtanh.pop %v248
    %v255 = vtanh.pop %v251
    %v256 = vpack.c.bf16 %v255, %v254
    %v257 = vld [vmem:[#allocation7] sm:$0xff]
    %v258 = vld [vmem:[#allocation7 + $0x8] sm:$0xf]
    %v259 = vld [vmem:[#allocation7 + $0xc] sm:$0xff]
    %v260 = vld [vmem:[#allocation7 + $0x14] sm:$0xf]
    %v261 = vld [vmem:[#allocation7 + $0x18] sm:$0xff]
    %v262 = vld [vmem:[#allocation7 + $0x20] sm:$0xf]
    %v263 = vld [vmem:[#allocation7 + $0x24] sm:$0xff]
    %v264 = vld [vmem:[#allocation7 + $0x2c] sm:$0xf]
    %v265 = vld [vmem:[#allocation7 + $0x30] sm:$0xff]
    %v266 = vld [vmem:[#allocation7 + $0x38] sm:$0xf]
    %v267 = vld [vmem:[#allocation7 + $0x3c] sm:$0xff]
    %v268 = vld [vmem:[#allocation7 + $0x44] sm:$0xf]
    %v269 = vld [vmem:[#allocation7 + $0x48] sm:$0xff]
    %v270 = vld [vmem:[#allocation7 + $0x50] sm:$0xf]
    %v271 = vld [vmem:[#allocation7 + $0x54] sm:$0xff]
    %v272 = vld [vmem:[#allocation7 + $0x5c] sm:$0xf]
    %v273 = vld [vmem:[#allocation7 + $0x60] sm:$0xff]
    %v274 = vld [vmem:[#allocation7 + $0x68] sm:$0xf]
    %v275 = vld [vmem:[#allocation7 + $0x6c] sm:$0xff]
    %v276 = vld [vmem:[#allocation7 + $0x74] sm:$0xf]
    %v277 = vld [vmem:[#allocation7 + $0x78] sm:$0xff]
    %v278 = vld [vmem:[#allocation7 + $0x80] sm:$0xf]
    %v279 = vld [vmem:[#allocation7 + $0x84] sm:$0xff]
    %v280 = vld [vmem:[#allocation7 + $0x8c] sm:$0xf]
    %v281 = vld [vmem:[#allocation7 + $0x90] sm:$0xff]
    %v282 = vld [vmem:[#allocation7 + $0x98] sm:$0xf]
    %v283 = vld [vmem:[#allocation7 + $0x9c] sm:$0xff]
    %v284 = vld [vmem:[#allocation7 + $0xa4] sm:$0xf]
    %v285 = vld [vmem:[#allocation7 + $0xa8] sm:$0xff]
    %v286 = vld [vmem:[#allocation7 + $0xb0] sm:$0xf]
    %v287 = vld [vmem:[#allocation7 + $0xb4] sm:$0xff]
    %v288 = vld [vmem:[#allocation7 + $0xbc] sm:$0xf]
    %v289 = vld [vmem:[%s4] sm:$0x7]
    %v291 = vlaneseq
    %v292 = vshrl.u32 %v291, 7
    %v293 = vsub.s32 0, %v292
    %v294 = vrot.slane %v289, %v293
    %v295 = vlaneseq
    %v296 = vshrl.u32 %v295, 7
    %v297 = vsub.s32 1, %v296
    %v298 = vrot.slane %v289, %v297
    %v299 = vlaneseq
    %v300 = vshrl.u32 %v299, 7
    %v301 = vsub.s32 2, %v300
    %v302 = vrot.slane %v289, %v301
    %v338 = vunpack.c.l.b16 %v257
    %v339 = vunpack.c.h.b16 %v257
    %v340 = vunpack.c.l.b16 %v258
    %v341 = vunpack.c.l.b16 %v259
    %v342 = vunpack.c.h.b16 %v259
    %v343 = vunpack.c.l.b16 %v260
    %v344 = vunpack.c.l.b16 %v261
    %v345 = vunpack.c.h.b16 %v261
    %v346 = vunpack.c.l.b16 %v262
    %v347 = vunpack.c.l.b16 %v263
    %v348 = vunpack.c.h.b16 %v263
    %v349 = vunpack.c.l.b16 %v264
    %v350 = vunpack.c.l.b16 %v265
    %v351 = vunpack.c.h.b16 %v265
    %v352 = vunpack.c.l.b16 %v266
    %v353 = vunpack.c.l.b16 %v267
    %v354 = vunpack.c.h.b16 %v267
    %v355 = vunpack.c.l.b16 %v268
    %v356 = vunpack.c.l.b16 %v269
    %v357 = vunpack.c.h.b16 %v269
    %v358 = vunpack.c.l.b16 %v270
    %v359 = vunpack.c.l.b16 %v271
    %v360 = vunpack.c.h.b16 %v271
    %v361 = vunpack.c.l.b16 %v272
    %v362 = vunpack.c.l.b16 %v273
    %v363 = vunpack.c.h.b16 %v273
    %v364 = vunpack.c.l.b16 %v274
    %v365 = vunpack.c.l.b16 %v275
    %v366 = vunpack.c.h.b16 %v275
    %v367 = vunpack.c.l.b16 %v276
    %v368 = vunpack.c.l.b16 %v277
    %v369 = vunpack.c.h.b16 %v277
    %v370 = vunpack.c.l.b16 %v278
    %v371 = vunpack.c.l.b16 %v279
    %v372 = vunpack.c.h.b16 %v279
    %v373 = vunpack.c.l.b16 %v280
    %v374 = vunpack.c.l.b16 %v281
    %v375 = vunpack.c.h.b16 %v281
    %v376 = vunpack.c.l.b16 %v282
    %v377 = vunpack.c.l.b16 %v283
    %v378 = vunpack.c.h.b16 %v283
    %v379 = vunpack.c.l.b16 %v284
    %v380 = vunpack.c.l.b16 %v285
    %v381 = vunpack.c.h.b16 %v285
    %v382 = vunpack.c.l.b16 %v286
    %v383 = vunpack.c.l.b16 %v287
    %v384 = vunpack.c.h.b16 %v287
    %v385 = vunpack.c.l.b16 %v288
    %v386 = vpack.c.b16 %v341, %v338
    %v387 = vpack.c.b16 %v342, %v339
    %v388 = vpack.c.b16 %v343, %v340
    %v389 = vpack.c.b16 %v347, %v344
    %v390 = vpack.c.b16 %v348, %v345
    %v391 = vpack.c.b16 %v349, %v346
    %v392 = vpack.c.b16 %v353, %v350
    %v393 = vpack.c.b16 %v354, %v351
    %v394 = vpack.c.b16 %v355, %v352
    %v395 = vpack.c.b16 %v359, %v356
    %v396 = vpack.c.b16 %v360, %v357
    %v397 = vpack.c.b16 %v361, %v358
    %v398 = vpack.c.b16 %v365, %v362
    %v399 = vpack.c.b16 %v366, %v363
    %v400 = vpack.c.b16 %v367, %v364
    %v401 = vpack.c.b16 %v371, %v368
    %v402 = vpack.c.b16 %v372, %v369
    %v403 = vpack.c.b16 %v373, %v370
    %v404 = vpack.c.b16 %v377, %v374
    %v405 = vpack.c.b16 %v378, %v375
    %v406 = vpack.c.b16 %v379, %v376
    %v407 = vpack.c.b16 %v383, %v380
    %v408 = vpack.c.b16 %v384, %v381
    %v409 = vpack.c.b16 %v385, %v382
    %434 = vmatprep.subr.bf16.mxu0 %v387
    %435 = vmatpush1.bf16.msra.mxu0 %v386
    %436 = vmatprep.subr.bf16.mxu0 %v390
    %437 = vmatpush1.bf16.msra.mxu0 %v389
    %438 = vmatprep.subr.bf16.mxu0 %v393
    %439 = vmatpush1.bf16.msra.mxu0 %v392
    %440 = vmatprep.subr.bf16.mxu0 %v396
    %441 = vmatpush1.bf16.msra.mxu0 %v395
    %442 = vmatprep.subr.bf16.mxu0 %v399
    %443 = vmatpush1.bf16.msra.mxu0 %v398
    %444 = vmatprep.subr.bf16.mxu0 %v402
    %445 = vmatpush1.bf16.msra.mxu0 %v401
    %446 = vmatprep.subr.bf16.mxu0 %v405
    %447 = vmatpush1.bf16.msra.mxu0 %v404
    %448 = vmatprep.subr.bf16.mxu0 %v408
    %449 = vmatpush1.bf16.msra.mxu0 %v407
    %450 = vmatprep.subr.bf16.mxu0 0
    %451 = vmatpush1.bf16.msra.mxu0 0
    %452 = vmatprep.subr.bf16.mxu0 0
    %453 = vmatpush1.bf16.msra.mxu0 0
    %454 = vmatprep.subr.bf16.mxu0 0
    %455 = vmatpush1.bf16.msra.mxu0 0
    %456 = vmatprep.subr.bf16.mxu0 0
    %457 = vmatpush1.bf16.msra.mxu0 0
    %458 = vmatprep.subr.bf16.mxu0 0
    %459 = vmatpush1.bf16.msra.mxu0 0
    %460 = vmatprep.subr.bf16.mxu0 0
    %461 = vmatpush1.bf16.msra.mxu0 0
    %462 = vmatprep.subr.bf16.mxu0 0
    %463 = vmatpush1.bf16.msra.mxu0 0
    %464 = vmatprep.subr.bf16.mxu0 0
    %465 = vmatpush1.bf16.msra.mxu0 0
    %466 = vmatprep.mubr.bf16.mxu0 0
    %467 = vmatmul.mubr.bf16.gmra.mrb[0].mxu0 %v256
    %v468 = vpop.f32.mrb[0].mxu0
    %v469 = vadd.f32 %v294, %v468
    %v470 = vpop.f32.mrb[0].mxu0
    %v471 = vadd.f32 %v298, %v470
    %v472 = vpop.f32.mrb[0].mxu0
    %v473 = vadd.f32 %v294, %v472
    %v474 = vpop.f32.mrb[0].mxu0
    %v475 = vadd.f32 %v298, %v474
    %476 = vdwg.mxu0
    %477 = vmatprep.subr.bf16.mxu0 0
    %478 = vmatpush1.bf16.msra.mxu0 %v388
    %479 = vmatprep.subr.bf16.mxu0 0
    %480 = vmatpush1.bf16.msra.mxu0 %v391
    %481 = vmatprep.subr.bf16.mxu0 0
    %482 = vmatpush1.bf16.msra.mxu0 %v394
    %483 = vmatprep.subr.bf16.mxu0 0
    %484 = vmatpush1.bf16.msra.mxu0 %v397
    %485 = vmatprep.subr.bf16.mxu0 0
    %486 = vmatpush1.bf16.msra.mxu0 %v400
    %487 = vmatprep.subr.bf16.mxu0 0
    %488 = vmatpush1.bf16.msra.mxu0 %v403
    %489 = vmatprep.subr.bf16.mxu0 0
    %490 = vmatpush1.bf16.msra.mxu0 %v406
    %491 = vmatprep.subr.bf16.mxu0 0
    %492 = vmatpush1.bf16.msra.mxu0 %v409
    %493 = vmatprep.subr.bf16.mxu0 0
    %494 = vmatpush1.bf16.msra.mxu0 0
    %495 = vmatprep.subr.bf16.mxu0 0
    %496 = vmatpush1.bf16.msra.mxu0 0
    %497 = vmatprep.subr.bf16.mxu0 0
    %498 = vmatpush1.bf16.msra.mxu0 0
    %499 = vmatprep.subr.bf16.mxu0 0
    %500 = vmatpush1.bf16.msra.mxu0 0
    %501 = vmatprep.subr.bf16.mxu0 0
    %502 = vmatpush1.bf16.msra.mxu0 0
    %503 = vmatprep.subr.bf16.mxu0 0
    %504 = vmatpush1.bf16.msra.mxu0 0
    %505 = vmatprep.subr.bf16.mxu0 0
    %506 = vmatpush1.bf16.msra.mxu0 0
    %507 = vmatprep.subr.bf16.mxu0 0
    %508 = vmatpush1.bf16.msra.mxu0 0
    %509 = vmatprep.mubr.bf16.mxu0 0
    %510 = vmatmul.mubr.bf16.gmra.mrb[0].mxu0 %v256
    %v511 = vpop.f32.mrb[0].mxu0
    %v512 = vadd.f32 %v302, %v511
    %v513 = vpop.f32.mrb[0].mxu0
    %v514 = vpop.f32.mrb[0].mxu0
    %v515 = vadd.f32 %v302, %v514
    %v516 = vpop.f32.mrb[0].mxu0
    %517 = vdwg.mxu0
    %518 = vst [vmem:[#allocation8] sm:$0xff] %v469
    %519 = vst [vmem:[#allocation8 + $0x8] sm:$0xff] %v473
    %v520 = vsub.f32 0.0, %v471
    %v521 = vsub.f32 0.0, %v512
    %v522 = vsub.f32 0.0, %v475
    %v523 = vsub.f32 0.0, %v515
    %v524 = vmul.f32 %v520, 1.442695
    %v525 = vpow.pop %v524
    %v526 = vmul.f32 %v521, 1.442695
    %v527 = vpow.pop %v526
    %v528 = vmul.f32 %v522, 1.442695
    %v529 = vpow.pop %v528
    %v530 = vmul.f32 %v523, 1.442695
    %v531 = vpow.pop %v530
    %v532 = vadd.f32 %v525, 1.0
    %v533 = vadd.f32 %v527, 1.0
    %v534 = vadd.f32 %v529, 1.0
    %v535 = vadd.f32 %v531, 1.0
    %v536 = vrcp.pop %v532
    %v537 = vrcp.pop %v533
    %v538 = vrcp.pop %v534
    %v539 = vrcp.pop %v535
    %540 = vst [vmem:[#allocation9] sm:$0xff] %v536
    %541 = vst [vmem:[#allocation9 + $0x8] sm:$0xff] %v537
    %542 = vst [vmem:[#allocation9 + $0x10] sm:$0xff] %v538
    %543 = vst [vmem:[#allocation9 + $0x18] sm:$0xff] %v539
    // Predicated region
    $region34: #{tpu_custom_call.1} parent=1 // pred_check
      _
    $region35: #{tpu_custom_call.1} parent=1 // pred_check_branch
      %545 = sbr.rel (0) target = $region37
    $region36: #{tpu_custom_call.1} parent=1 // pred_region
      %s547 = ssub.s32 256, 256
      %548 = vsyncadd [#allocation4], %s547
      %s549 = sshll.u32 [#allocation8], 4
      %s550 = int_to_ptr.vmem [resolvable:$true] %s549
      %555 = dma.vmem_to_hbm [thread:$0]  %s550, 256, %s5, [#allocation4], 128, 128, 8
    $region37: #{tpu_custom_call.1} parent=1 // pred_fallthru
      _
    // Predicated region
    $region38: #{tpu_custom_call.1} parent=1 // pred_check
      _
    $region39: #{tpu_custom_call.1} parent=1 // pred_check_branch
      %557 = sbr.rel (0) target = $region41
    $region40: #{tpu_custom_call.1} parent=1 // pred_region
      %s559 = ssub.s32 512, 512
      %560 = vsyncadd [#allocation10], %s559
      %s561 = sshll.u32 [#allocation9], 4
      %s562 = int_to_ptr.vmem [resolvable:$true] %s561
      %567 = dma.vmem_to_hbm [thread:$0]  %s562, 512, %s6, [#allocation10], 256, 256, 16
    $region41: #{tpu_custom_call.1} parent=1 // pred_fallthru
      _
    // Predicated region
    $region42: #{tpu_custom_call.1} parent=1 // pred_check
      _
    $region43: #{tpu_custom_call.1} parent=1 // pred_check_branch
      %569 = sbr.rel (0) target = $region45
    $region44: #{tpu_custom_call.1} parent=1 // pred_region
      %570 = dma.done [#allocation4], 256
    $region45: #{tpu_custom_call.1} parent=1 // pred_fallthru
      _
    // Predicated region
    $region46: #{tpu_custom_call.1} parent=1 // pred_check
      _
    $region47: #{tpu_custom_call.1} parent=1 // pred_check_branch
      %572 = sbr.rel (0) target = $region49
    $region48: #{tpu_custom_call.1} parent=1 // pred_region
      %573 = dma.done [#allocation10], 512
    $region49: #{tpu_custom_call.1} parent=1 // pred_fallthru
      _
    %574 = vsyncpa [#allocation3], 1
    %575 = vsyncpa [#allocation6], 1
    %576 = vsyncpa [#allocation4], 1
    %577 = vsyncpa [#allocation10], 1

</llo_original>
